<compile_context>
chip_gen: v6e
topology: v6e:2x2x1
jax: 0.10.0
libtpu: 0.0.40
codegen_flags: <defaults>
</compile_context>

<pallas_src>
import functools

import jax
import jax.numpy as jnp
from jax.experimental import pallas as pl
from jax.experimental.pallas import tpu as pltpu


def _round_up(x, m):
    return ((x + m - 1) // m) * m


# ----------------------------------------------------------------------------
# Pallas kernels: fused twin-head MLP (3 packed matmuls)
# ----------------------------------------------------------------------------
def _mlp_tail(h, w2_ref, w3_ref, b, h2x2, out_ref):
    """Shared layers 2 & 3 (block-diagonal packed heads)."""
    h = jnp.maximum(h, 0.0)                                    # f32 ReLU (v5e-safe)
    h = jnp.dot(h.astype(jnp.bfloat16), w2_ref[...],
                preferred_element_type=jnp.float32) + b[1:2, :h2x2]
    h = jnp.maximum(h, 0.0)
    # Layer 3: block-diagonal W3 -> (tb, 2); q0 lands in lane 0, q1 in lane 1.
    out_ref[...] = jnp.dot(h.astype(jnp.bfloat16), w3_ref[...],
                           preferred_element_type=jnp.float32) + b[2:3, :2]


def critic_kernel_merged(obs_ref, act_ref, w1_ref, w2_ref, w3_ref, b_ref,
                         out_ref, *, h1x2, h2x2):
    b = b_ref[...]                                             # (3, Wmax) packed biases
    # Fused obs/action concat (lane shift+select in VMEM, no HBM intermediate),
    # then a single layer-1 matmul — removes the near-empty K=act_dim MXU pass.
    x = jnp.concatenate([obs_ref[...], act_ref[...]], axis=-1).astype(jnp.bfloat16)
    h = jnp.dot(x, w1_ref[...], preferred_element_type=jnp.float32) + b[0:1, :h1x2]
    _mlp_tail(h, w2_ref, w3_ref, b, h2x2, out_ref)


def critic_kernel_split(obs_ref, act_ref, w1o_ref, w1a_ref, w2_ref, w3_ref,
                        b_ref, out_ref, *, h1x2, h2x2):
    # Fallback: split layer-1 matmul (used only if the unaligned lane concat
    # cannot be lowered by this Mosaic version).
    b = b_ref[...]
    h = (jnp.dot(obs_ref[...].astype(jnp.bfloat16), w1o_ref[...],
                 preferred_element_type=jnp.float32)
         + jnp.dot(act_ref[...].astype(jnp.bfloat16), w1a_ref[...],
                   preferred_element_type=jnp.float32)
         + b[0:1, :h1x2])
    _mlp_tail(h, w2_ref, w3_ref, b, h2x2, out_ref)


# ----------------------------------------------------------------------------
# One-time parameter packing (wrapper side, outside the kernel)
# ----------------------------------------------------------------------------
def pack_critic_params(params, w_dtype=jnp.bfloat16):
    """params: [head0, head1], each a list of 3 (W, b) f32 tuples."""
    (w1a, b1a), (w2a, b2a), (w3a, b3a) = params[0]
    (w1b, b1b), (w2b, b2b), (w3b, b3b) = params[1]
    h1 = w1a.shape[1]
    h2 = w2a.shape[1]

    # Layer 1: concat heads along the output axis -> (D, 2*H1).
    w1 = jnp.concatenate([w1a, w1b], axis=1)

    # Layers 2/3: block-diagonal packing. NOTE (v5e): packed widths 2*H1/2*H2 here
    # are 64 <= 128, so this stays a single MXU pass on v5e's 128-wide MXU; if the
    # hidden sizes ever grow past 64, cap packing at 128 on v5e.
    w2 = jnp.zeros((2 * h1, 2 * h2), jnp.float32)
    w2 = w2.at[:h1, :h2].set(w2a).at[h1:, h2:].set(w2b)
    w3 = jnp.zeros((2 * h2, 2), jnp.float32)
    w3 = w3.at[:h2, 0:1].set(w3a).at[h2:, 1:2].set(w3b)

    # All six biases packed into a single small f32 array.
    wmax = max(2 * h1, 2 * h2, 2)
    biases = jnp.zeros((3, wmax), jnp.float32)
    biases = biases.at[0, :2 * h1].set(jnp.concatenate([b1a, b1b]))
    biases = biases.at[1, :2 * h2].set(jnp.concatenate([b2a, b2b]))
    biases = biases.at[2, :2].set(jnp.stack([b3a[0], b3b[0]]))

    return (w1.astype(w_dtype), w2.astype(w_dtype), w3.astype(w_dtype), biases)


# ----------------------------------------------------------------------------
# Wrapper: batch-tiled pallas_call (no input padding; ragged last block)
# ----------------------------------------------------------------------------
def _critic_forward_impl(obs, action, packed, *, merged, tb_max):
    w1, w2, w3, biases = packed
    B, obs_dim = obs.shape
    act_dim = action.shape[1]
    h1x2, h2x2 = w2.shape

    # Batch tiling:
    #  - tiny/small B: a single full block (per-step overhead would dominate).
    #  - B > 256: at least 2 grid steps so ("parallel",) can use both v7x TCs,
    #    with tiles capped at tb_max to stay inside the scoped-VMEM budget.
    if B <= 256:
        tb = B
    else:
        tb = min(tb_max, _round_up(pl.cdiv(B, 2), 8))
    grid = (pl.cdiv(B, tb),)   # ragged last block: Pallas masks OOB rows, no jnp.pad

    resident = lambda i: (0, 0)   # weights/biases: same block every grid step
    data_spec = lambda d: pl.BlockSpec((tb, d), lambda i: (i, 0))

    if merged:
        kernel = functools.partial(critic_kernel_merged, h1x2=h1x2, h2x2=h2x2)
        w_args = (w1,)
    else:
        kernel = functools.partial(critic_kernel_split, h1x2=h1x2, h2x2=h2x2)
        w_args = (w1[:obs_dim], w1[obs_dim:])

    in_specs = ([data_spec(obs_dim), data_spec(act_dim)]
                + [pl.BlockSpec(w.shape, resident) for w in w_args]
                + [pl.BlockSpec(w2.shape, resident),
                   pl.BlockSpec(w3.shape, resident),
                   pl.BlockSpec(biases.shape, resident)])

    return pl.pallas_call(
        kernel,
        out_shape=jax.ShapeDtypeStruct((B, 2), jnp.float32),
        grid=grid,
        in_specs=in_specs,
        out_specs=pl.BlockSpec((tb, 2), lambda i: (i, 0)),
        compiler_params=pltpu.CompilerParams(
            dimension_semantics=("parallel",),
            # Explicit budget: tb=4096 needs ~20 MiB (> v5e's 16 MiB default
            # scoped limit) and must stay well under v7x's 64 MiB physical VMEM.
            vmem_limit_bytes=48 * 1024 * 1024),
    )(obs, action, *w_args, w2, w3, biases)


_LAYER1_MERGED_OK = True  # flipped once if the fused lane-concat fails to lower


def critic_forward(obs, action, packed, *, tb_max=4096):
    global _LAYER1_MERGED_OK
    if _LAYER1_MERGED_OK:
        try:
            return _critic_forward_impl(obs, action, packed, merged=True,
                                        tb_max=tb_max)
        except Exception:
            # Mosaic rejected the unaligned lane concat on this version; fall back
            # to the (slightly slower but proven) split layer-1 matmul.
            _LAYER1_MERGED_OK = False
    return _critic_forward_impl(obs, action, packed, merged=False, tb_max=tb_max)


# ----------------------------------------------------------------------------
# Deterministic parameter init (PyTorch nn.Linear-style uniform)
# ----------------------------------------------------------------------------
def init_linear(key, fan_in, fan_out):
    kw, kb = jax.random.split(key)
    bound = 1.0 / jnp.sqrt(float(fan_in))
    w = jax.random.uniform(kw, (fan_in, fan_out), jnp.float32, -bound, bound)
    b = jax.random.uniform(kb, (fan_out,), jnp.float32, -bound, bound)
    return w, b


def init_critic(key, in_features, layers):
    dims = (in_features, *layers, 1)
    params = []
    for _ in range(2):  # two Q heads
        head = []
        for i in range(len(dims) - 1):
            key, sub = jax.random.split(key)
            head.append(init_linear(sub, dims[i], dims[i + 1]))
        params.append(head)
    return params


# ----------------------------------------------------------------------------
# Pure-JAX reference (same bf16-matmul / f32-accumulate numerics as the kernel)
# ----------------------------------------------------------------------------
def critic_ref(obs, action, params):
    x = jnp.concatenate([obs, action], axis=-1)
    outs = []
    for head in params:
        h = x
        for li, (w, b) in enumerate(head):
            h = jnp.dot(h.astype(jnp.bfloat16), w.astype(jnp.bfloat16),
                        preferred_element_type=jnp.float32) + b
            if li < len(head) - 1:
                h = jnp.maximum(h, 0.0)
        outs.append(h)
    return jnp.concatenate(outs, axis=-1)


if __name__ == "__main__":
    key = jax.random.PRNGKey(0)
    k_obs, k_act, k_par, k_obs2, k_act2 = jax.random.split(key, 5)

    obs_dim, act_dim = 24, 8          # in_features = 32
    layers = (32, 32)
    params = init_critic(k_par, obs_dim + act_dim, layers)
    packed = pack_critic_params(params)

    # Small batch: single full block, grid=(1,).
    B = 4
    obs = jax.random.normal(k_obs, (B, obs_dim), jnp.float32)
    action = jax.random.normal(k_act, (B, act_dim), jnp.float32)
    out = jax.block_until_ready(critic_forward(obs, action, packed))
    ref = critic_ref(obs, action, params)
    assert out.shape == (B, 2), out.shape
    assert jnp.allclose(out, ref, atol=1e-3, rtol=1e-3), (out, ref)

    # Larger batch: 2 grid steps with a ragged last block (exercises the
    # pipelined, pad-free path and the >=2-step megacore split).
    B2 = 300
    obs2 = jax.random.normal(k_obs2, (B2, obs_dim), jnp.float32)
    act2 = jax.random.normal(k_act2, (B2, act_dim), jnp.float32)
    out2 = jax.block_until_ready(critic_forward(obs2, act2, packed))
    ref2 = critic_ref(obs2, act2, params)
    assert out2.shape == (B2, 2), out2.shape
    assert jnp.allclose(out2, ref2, atol=1e-3, rtol=1e-3)

    print("KERNEL_OK")
</pallas_src>

<mosaic_0001>
module attributes {stable_mosaic.version = 11 : i64} {
  func.func @critic_kernel_merged(%arg0: i32, %arg1: memref<4x24xf32, #tpu.memory_space<vmem>>, %arg2: memref<4x8xf32, #tpu.memory_space<vmem>>, %arg3: memref<32x64xbf16, #tpu.memory_space<vmem>>, %arg4: memref<64x64xbf16, #tpu.memory_space<vmem>>, %arg5: memref<64x2xbf16, #tpu.memory_space<vmem>>, %arg6: memref<3x64xf32, #tpu.memory_space<vmem>>, %arg7: memref<4x2xf32, #tpu.memory_space<vmem>>) attributes {dimension_semantics = [#tpu.dimension_semantics<parallel>], iteration_bounds = array<i64: 1>, scalar_prefetch = 0 : i64, scratch_operands = 0 : i64, tpu.core_type = #tpu.core_type<tc>, window_params = [{transform_indices = @transform_0, window_bounds = array<i64: 4, 24>}, {transform_indices = @transform_1, window_bounds = array<i64: 4, 8>}, {pipeline_mode = #tpu.pipeline_mode<synchronous>, transform_indices = @transform_2, window_bounds = array<i64: 32, 64>}, {pipeline_mode = #tpu.pipeline_mode<synchronous>, transform_indices = @transform_3, window_bounds = array<i64: 64, 64>}, {pipeline_mode = #tpu.pipeline_mode<synchronous>, transform_indices = @transform_4, window_bounds = array<i64: 64, 2>}, {pipeline_mode = #tpu.pipeline_mode<synchronous>, transform_indices = @transform_5, window_bounds = array<i64: 3, 64>}, {transform_indices = @transform_6, window_bounds = array<i64: 4, 2>}]} {
    %c0 = arith.constant 0 : index
    %c0_0 = arith.constant 0 : index
    %0 = vector.load %arg6[%c0, %c0_0] : memref<3x64xf32, #tpu.memory_space<vmem>>, vector<3x64xf32>
    %c0_1 = arith.constant 0 : index
    %c0_2 = arith.constant 0 : index
    %1 = vector.load %arg1[%c0_1, %c0_2] : memref<4x24xf32, #tpu.memory_space<vmem>>, vector<4x24xf32>
    %c0_3 = arith.constant 0 : index
    %c0_4 = arith.constant 0 : index
    %2 = vector.load %arg2[%c0_3, %c0_4] : memref<4x8xf32, #tpu.memory_space<vmem>>, vector<4x8xf32>
    %3 = tpu.concatenate %1, %2 in 1 : vector<4x24xf32>, vector<4x8xf32> -> vector<4x32xf32>
    %4 = arith.truncf %3 : vector<4x32xf32> to vector<4x32xbf16>
    %c0_5 = arith.constant 0 : index
    %c0_6 = arith.constant 0 : index
    %5 = vector.load %arg3[%c0_5, %c0_6] : memref<32x64xbf16, #tpu.memory_space<vmem>>, vector<32x64xbf16>
    %cst = arith.constant dense<0.000000e+00> : vector<4x64xf32>
    %6 = tpu.matmul %4, %5, %cst {dimension_numbers = #tpu.dot_dimension_numbers<[1], [0], [0], [1], [0, 0, 1, 1], [], []>} : vector<4x32xbf16>, vector<32x64xbf16>, vector<4x64xf32> -> vector<4x64xf32>
    %7 = vector.extract_strided_slice %0 {offsets = [0, 0], sizes = [1, 64], strides = [1, 1]} : vector<3x64xf32> to vector<1x64xf32>
    %8 = vector.broadcast %7 : vector<1x64xf32> to vector<4x64xf32>
    %9 = arith.addf %6, %8 : vector<4x64xf32>
    %cst_7 = arith.constant 0.000000e+00 : f32
    %10 = vector.broadcast %cst_7 : f32 to vector<4x64xf32>
    %11 = arith.maximumf %9, %10 : vector<4x64xf32>
    %12 = arith.truncf %11 : vector<4x64xf32> to vector<4x64xbf16>
    %c0_8 = arith.constant 0 : index
    %c0_9 = arith.constant 0 : index
    %13 = vector.load %arg4[%c0_8, %c0_9] : memref<64x64xbf16, #tpu.memory_space<vmem>>, vector<64x64xbf16>
    %cst_10 = arith.constant dense<0.000000e+00> : vector<4x64xf32>
    %14 = tpu.matmul %12, %13, %cst_10 {dimension_numbers = #tpu.dot_dimension_numbers<[1], [0], [0], [1], [0, 0, 1, 1], [], []>} : vector<4x64xbf16>, vector<64x64xbf16>, vector<4x64xf32> -> vector<4x64xf32>
    %15 = vector.extract_strided_slice %0 {offsets = [1, 0], sizes = [1, 64], strides = [1, 1]} : vector<3x64xf32> to vector<1x64xf32>
    %16 = vector.broadcast %15 : vector<1x64xf32> to vector<4x64xf32>
    %17 = arith.addf %14, %16 : vector<4x64xf32>
    %cst_11 = arith.constant 0.000000e+00 : f32
    %18 = vector.broadcast %cst_11 : f32 to vector<4x64xf32>
    %19 = arith.maximumf %17, %18 : vector<4x64xf32>
    %20 = arith.truncf %19 : vector<4x64xf32> to vector<4x64xbf16>
    %c0_12 = arith.constant 0 : index
    %c0_13 = arith.constant 0 : index
    %21 = vector.load %arg5[%c0_12, %c0_13] : memref<64x2xbf16, #tpu.memory_space<vmem>>, vector<64x2xbf16>
    %cst_14 = arith.constant dense<0.000000e+00> : vector<4x2xf32>
    %22 = tpu.matmul %20, %21, %cst_14 {dimension_numbers = #tpu.dot_dimension_numbers<[1], [0], [0], [1], [0, 0, 1, 1], [], []>} : vector<4x64xbf16>, vector<64x2xbf16>, vector<4x2xf32> -> vector<4x2xf32>
    %23 = vector.extract_strided_slice %0 {offsets = [2, 0], sizes = [1, 2], strides = [1, 1]} : vector<3x64xf32> to vector<1x2xf32>
    %24 = vector.broadcast %23 : vector<1x2xf32> to vector<4x2xf32>
    %25 = arith.addf %22, %24 : vector<4x2xf32>
    %c0_15 = arith.constant 0 : index
    %c0_16 = arith.constant 0 : index
    %26 = vector.load %arg7[%c0_15, %c0_16] : memref<4x2xf32, #tpu.memory_space<vmem>>, vector<4x2xf32>
    tpu.vector_store %arg7[%c0_15, %c0_16], %25 {strides = array<i32>} : memref<4x2xf32, #tpu.memory_space<vmem>>, vector<4x2xf32>,
    return
  }
  func.func @transform_0(%arg0: i32) -> (i32, i32) {
    %c0_i32 = arith.constant 0 : i32
    %c0_i32_0 = arith.constant 0 : i32
    return %arg0, %c0_i32 : i32, i32
  }
  func.func @transform_1(%arg0: i32) -> (i32, i32) {
    %c0_i32 = arith.constant 0 : i32
    %c0_i32_0 = arith.constant 0 : i32
    return %arg0, %c0_i32 : i32, i32
  }
  func.func @transform_2(%arg0: i32) -> (i32, i32) {
    %c0_i32 = arith.constant 0 : i32
    %c0_i32_0 = arith.constant 0 : i32
    %c0_i32_1 = arith.constant 0 : i32
    return %c0_i32, %c0_i32_0 : i32, i32
  }
  func.func @transform_3(%arg0: i32) -> (i32, i32) {
    %c0_i32 = arith.constant 0 : i32
    %c0_i32_0 = arith.constant 0 : i32
    %c0_i32_1 = arith.constant 0 : i32
    return %c0_i32, %c0_i32_0 : i32, i32
  }
  func.func @transform_4(%arg0: i32) -> (i32, i32) {
    %c0_i32 = arith.constant 0 : i32
    %c0_i32_0 = arith.constant 0 : i32
    %c0_i32_1 = arith.constant 0 : i32
    return %c0_i32, %c0_i32_0 : i32, i32
  }
  func.func @transform_5(%arg0: i32) -> (i32, i32) {
    %c0_i32 = arith.constant 0 : i32
    %c0_i32_0 = arith.constant 0 : i32
    %c0_i32_1 = arith.constant 0 : i32
    return %c0_i32, %c0_i32_0 : i32, i32
  }
  func.func @transform_6(%arg0: i32) -> (i32, i32) {
    %c0_i32 = arith.constant 0 : i32
    %c0_i32_0 = arith.constant 0 : i32
    return %arg0, %c0_i32 : i32, i32
  }
}

module attributes {stable_mosaic.version = 11 : i64} {
  func.func @critic_kernel_split(%arg0: i32, %arg1: memref<4x24xf32, #tpu.memory_space<vmem>>, %arg2: memref<4x8xf32, #tpu.memory_space<vmem>>, %arg3: memref<24x64xbf16, #tpu.memory_space<vmem>>, %arg4: memref<8x64xbf16, #tpu.memory_space<vmem>>, %arg5: memref<64x64xbf16, #tpu.memory_space<vmem>>, %arg6: memref<64x2xbf16, #tpu.memory_space<vmem>>, %arg7: memref<3x64xf32, #tpu.memory_space<vmem>>, %arg8: memref<4x2xf32, #tpu.memory_space<vmem>>) attributes {dimension_semantics = [#tpu.dimension_semantics<parallel>], iteration_bounds = array<i64: 1>, scalar_prefetch = 0 : i64, scratch_operands = 0 : i64, tpu.core_type = #tpu.core_type<tc>, window_params = [{transform_indices = @transform_0, window_bounds = array<i64: 4, 24>}, {transform_indices = @transform_1, window_bounds = array<i64: 4, 8>}, {pipeline_mode = #tpu.pipeline_mode<synchronous>, transform_indices = @transform_2, window_bounds = array<i64: 24, 64>}, {pipeline_mode = #tpu.pipeline_mode<synchronous>, transform_indices = @transform_3, window_bounds = array<i64: 8, 64>}, {pipeline_mode = #tpu.pipeline_mode<synchronous>, transform_indices = @transform_4, window_bounds = array<i64: 64, 64>}, {pipeline_mode = #tpu.pipeline_mode<synchronous>, transform_indices = @transform_5, window_bounds = array<i64: 64, 2>}, {pipeline_mode = #tpu.pipeline_mode<synchronous>, transform_indices = @transform_6, window_bounds = array<i64: 3, 64>}, {transform_indices = @transform_7, window_bounds = array<i64: 4, 2>}]} {
    %c0 = arith.constant 0 : index
    %c0_0 = arith.constant 0 : index
    %0 = vector.load %arg7[%c0, %c0_0] : memref<3x64xf32, #tpu.memory_space<vmem>>, vector<3x64xf32>
    %c0_1 = arith.constant 0 : index
    %c0_2 = arith.constant 0 : index
    %1 = vector.load %arg1[%c0_1, %c0_2] : memref<4x24xf32, #tpu.memory_space<vmem>>, vector<4x24xf32>
    %2 = arith.truncf %1 : vector<4x24xf32> to vector<4x24xbf16>
    %c0_3 = arith.constant 0 : index
    %c0_4 = arith.constant 0 : index
    %3 = vector.load %arg3[%c0_3, %c0_4] : memref<24x64xbf16, #tpu.memory_space<vmem>>, vector<24x64xbf16>
    %cst = arith.constant dense<0.000000e+00> : vector<4x64xf32>
    %4 = tpu.matmul %2, %3, %cst {dimension_numbers = #tpu.dot_dimension_numbers<[1], [0], [0], [1], [0, 0, 1, 1], [], []>} : vector<4x24xbf16>, vector<24x64xbf16>, vector<4x64xf32> -> vector<4x64xf32>
    %c0_5 = arith.constant 0 : index
    %c0_6 = arith.constant 0 : index
    %5 = vector.load %arg2[%c0_5, %c0_6] : memref<4x8xf32, #tpu.memory_space<vmem>>, vector<4x8xf32>
    %6 = arith.truncf %5 : vector<4x8xf32> to vector<4x8xbf16>
    %c0_7 = arith.constant 0 : index
    %c0_8 = arith.constant 0 : index
    %7 = vector.load %arg4[%c0_7, %c0_8] : memref<8x64xbf16, #tpu.memory_space<vmem>>, vector<8x64xbf16>
    %cst_9 = arith.constant dense<0.000000e+00> : vector<4x64xf32>
    %8 = tpu.matmul %6, %7, %cst_9 {dimension_numbers = #tpu.dot_dimension_numbers<[1], [0], [0], [1], [0, 0, 1, 1], [], []>} : vector<4x8xbf16>, vector<8x64xbf16>, vector<4x64xf32> -> vector<4x64xf32>
    %9 = arith.addf %4, %8 : vector<4x64xf32>
    %10 = vector.extract_strided_slice %0 {offsets = [0, 0], sizes = [1, 64], strides = [1, 1]} : vector<3x64xf32> to vector<1x64xf32>
    %11 = vector.broadcast %10 : vector<1x64xf32> to vector<4x64xf32>
    %12 = arith.addf %9, %11 : vector<4x64xf32>
    %cst_10 = arith.constant 0.000000e+00 : f32
    %13 = vector.broadcast %cst_10 : f32 to vector<4x64xf32>
    %14 = arith.maximumf %12, %13 : vector<4x64xf32>
    %15 = arith.truncf %14 : vector<4x64xf32> to vector<4x64xbf16>
    %c0_11 = arith.constant 0 : index
    %c0_12 = arith.constant 0 : index
    %16 = vector.load %arg5[%c0_11, %c0_12] : memref<64x64xbf16, #tpu.memory_space<vmem>>, vector<64x64xbf16>
    %cst_13 = arith.constant dense<0.000000e+00> : vector<4x64xf32>
    %17 = tpu.matmul %15, %16, %cst_13 {dimension_numbers = #tpu.dot_dimension_numbers<[1], [0], [0], [1], [0, 0, 1, 1], [], []>} : vector<4x64xbf16>, vector<64x64xbf16>, vector<4x64xf32> -> vector<4x64xf32>
    %18 = vector.extract_strided_slice %0 {offsets = [1, 0], sizes = [1, 64], strides = [1, 1]} : vector<3x64xf32> to vector<1x64xf32>
    %19 = vector.broadcast %18 : vector<1x64xf32> to vector<4x64xf32>
    %20 = arith.addf %17, %19 : vector<4x64xf32>
    %cst_14 = arith.constant 0.000000e+00 : f32
    %21 = vector.broadcast %cst_14 : f32 to vector<4x64xf32>
    %22 = arith.maximumf %20, %21 : vector<4x64xf32>
    %23 = arith.truncf %22 : vector<4x64xf32> to vector<4x64xbf16>
    %c0_15 = arith.constant 0 : index
    %c0_16 = arith.constant 0 : index
    %24 = vector.load %arg6[%c0_15, %c0_16] : memref<64x2xbf16, #tpu.memory_space<vmem>>, vector<64x2xbf16>
    %cst_17 = arith.constant dense<0.000000e+00> : vector<4x2xf32>
    %25 = tpu.matmul %23, %24, %cst_17 {dimension_numbers = #tpu.dot_dimension_numbers<[1], [0], [0], [1], [0, 0, 1, 1], [], []>} : vector<4x64xbf16>, vector<64x2xbf16>, vector<4x2xf32> -> vector<4x2xf32>
    %26 = vector.extract_strided_slice %0 {offsets = [2, 0], sizes = [1, 2], strides = [1, 1]} : vector<3x64xf32> to vector<1x2xf32>
    %27 = vector.broadcast %26 : vector<1x2xf32> to vector<4x2xf32>
    %28 = arith.addf %25, %27 : vector<4x2xf32>
    %c0_18 = arith.constant 0 : index
    %c0_19 = arith.constant 0 : index
    %29 = vector.load %arg8[%c0_18, %c0_19] : memref<4x2xf32, #tpu.memory_space<vmem>>, vector<4x2xf32>
    tpu.vector_store %arg8[%c0_18, %c0_19], %28 {strides = array<i32>} : memref<4x2xf32, #tpu.memory_space<vmem>>, vector<4x2xf32>,
    return
  }
  func.func @transform_0(%arg0: i32) -> (i32, i32) {
    %c0_i32 = arith.constant 0 : i32
    %c0_i32_0 = arith.constant 0 : i32
    return %arg0, %c0_i32 : i32, i32
  }
  func.func @transform_1(%arg0: i32) -> (i32, i32) {
    %c0_i32 = arith.constant 0 : i32
    %c0_i32_0 = arith.constant 0 : i32
    return %arg0, %c0_i32 : i32, i32
  }
  func.func @transform_2(%arg0: i32) -> (i32, i32) {
    %c0_i32 = arith.constant 0 : i32
    %c0_i32_0 = arith.constant 0 : i32
    %c0_i32_1 = arith.constant 0 : i32
    return %c0_i32, %c0_i32_0 : i32, i32
  }
  func.func @transform_3(%arg0: i32) -> (i32, i32) {
    %c0_i32 = arith.constant 0 : i32
    %c0_i32_0 = arith.constant 0 : i32
    %c0_i32_1 = arith.constant 0 : i32
    return %c0_i32, %c0_i32_0 : i32, i32
  }
  func.func @transform_4(%arg0: i32) -> (i32, i32) {
    %c0_i32 = arith.constant 0 : i32
    %c0_i32_0 = arith.constant 0 : i32
    %c0_i32_1 = arith.constant 0 : i32
    return %c0_i32, %c0_i32_0 : i32, i32
  }
  func.func @transform_5(%arg0: i32) -> (i32, i32) {
    %c0_i32 = arith.constant 0 : i32
    %c0_i32_0 = arith.constant 0 : i32
    %c0_i32_1 = arith.constant 0 : i32
    return %c0_i32, %c0_i32_0 : i32, i32
  }
  func.func @transform_6(%arg0: i32) -> (i32, i32) {
    %c0_i32 = arith.constant 0 : i32
    %c0_i32_0 = arith.constant 0 : i32
    %c0_i32_1 = arith.constant 0 : i32
    return %c0_i32, %c0_i32_0 : i32, i32
  }
  func.func @transform_7(%arg0: i32) -> (i32, i32) {
    %c0_i32 = arith.constant 0 : i32
    %c0_i32_0 = arith.constant 0 : i32
    return %arg0, %c0_i32 : i32, i32
  }
}

</mosaic_0001>

<llo_original>
// kernel: tpu_custom_call.1
$region0: #{tpu_custom_call.1}
  #allocation0 [shape = 'u32[]', space=smem, size = 0x4, offset = 0x4, fixed_abs, tag = 'smem constant byte address 0x4 - core index']
  #allocation1 [shape = 'u32[144,128]{1,0:T(1,128)}', space=vmem, size = 0x12000, scoped, tag = 'internal scratch']
  %s0 = inlined_call_operand.vmem [shape: f32[4,24], index: 0, kind: input, shape index: {}]
  %s1 = inlined_call_operand.hbm [shape: f32[4,8], index: 1, kind: input, shape index: {}]
  %s2 = inlined_call_operand.hbm [shape: bf16[32,64], index: 2, kind: input, shape index: {}]
  %s3 = inlined_call_operand.vmem [shape: bf16[64,64], index: 3, kind: input, shape index: {}]
  %s4 = inlined_call_operand.vmem [shape: bf16[64,2], index: 4, kind: input, shape index: {}]
  %s5 = inlined_call_operand.vmem [shape: f32[3,64], index: 5, kind: input, shape index: {}]
  %s6 = inlined_call_operand.vmem [shape: f32[4,2], index: 6, kind: output, shape index: {}]
  %s7 = sld [smem:[#allocation0]]
  $region42: #{tpu_custom_call.1} parent=0
    _
  %s9 = ssub.s32 1, %s7
  %s10 = scalar_select 0, %s9, %s7
  $region1: #{tpu_custom_call.1} parent=0
    #allocation2 [shape = 'u8[2048]{0}', space=vmem, size = 0x800, scoped, tag = 'input window, operand 1, single buffered']
    #allocation3 [shape = 's32[1]{0}', space=sflag, size = 0x4, scoped, tag = 'scoped memory for tpu_custom_call.1']
    #allocation4 [shape = 'u8[8192]{0}', space=vmem, size = 0x2000, scoped, tag = 'input window, operand 2, single buffered']
    #allocation5 [shape = 's32[1]{0}', space=sflag, size = 0x4, scoped, tag = 'scoped memory for tpu_custom_call.1']
    %11 = vsyncpa [#allocation3], 0
    %12 = vsyncpa [#allocation5], 0
    // Predicated region
    $region2: #{tpu_custom_call.1} parent=1 // pred_check
      _
    $region3: #{tpu_custom_call.1} parent=1 // pred_check_branch
      %14 = sbr.rel (0) target = $region5
    $region4: #{tpu_custom_call.1} parent=1 // pred_region
      _
    $region5: #{tpu_custom_call.1} parent=1 // pred_fallthru
      _
    // Predicated region
    $region6: #{tpu_custom_call.1} parent=1 // pred_check
      _
    $region7: #{tpu_custom_call.1} parent=1 // pred_check_branch
      %16 = sbr.rel (0) target = $region9
    $region8: #{tpu_custom_call.1} parent=1 // pred_region
      %s18 = ssub.s32 64, 64
      %19 = vsyncadd [#allocation3], %s18
      %s21 = sshll.u32 [#allocation2], 4
      %s22 = int_to_ptr.vmem [resolvable:$true] %s21
      %24 = dma.hbm_to_vmem [thread:$0]  %s1, 64, %s22, [#allocation3]
    $region9: #{tpu_custom_call.1} parent=1 // pred_fallthru
      _
    // Predicated region
    $region10: #{tpu_custom_call.1} parent=1 // pred_check
      _
    $region11: #{tpu_custom_call.1} parent=1 // pred_check_branch
      %26 = sbr.rel (0) target = $region13
    $region12: #{tpu_custom_call.1} parent=1 // pred_region
      %s28 = ssub.s32 256, 256
      %29 = vsyncadd [#allocation5], %s28
      %s30 = sshll.u32 [#allocation4], 4
      %s31 = int_to_ptr.vmem [resolvable:$true] %s30
      %36 = dma.hbm_to_vmem [thread:$0]  %s2, 256, %s31, [#allocation5], 64, 64, 4
    $region13: #{tpu_custom_call.1} parent=1 // pred_fallthru
      _
    // Predicated region
    $region14: #{tpu_custom_call.1} parent=1 // pred_check
      _
    $region15: #{tpu_custom_call.1} parent=1 // pred_check_branch
      %38 = sbr.rel (0) target = $region17
    $region16: #{tpu_custom_call.1} parent=1 // pred_region
      _
    $region17: #{tpu_custom_call.1} parent=1 // pred_fallthru
      _
    // Predicated region
    $region18: #{tpu_custom_call.1} parent=1 // pred_check
      _
    $region19: #{tpu_custom_call.1} parent=1 // pred_check_branch
      %40 = sbr.rel (0) target = $region21
    $region20: #{tpu_custom_call.1} parent=1 // pred_region
      _
    $region21: #{tpu_custom_call.1} parent=1 // pred_fallthru
      _
    // Predicated region
    $region22: #{tpu_custom_call.1} parent=1 // pred_check
      _
    $region23: #{tpu_custom_call.1} parent=1 // pred_check_branch
      %42 = sbr.rel (0) target = $region25
    $region24: #{tpu_custom_call.1} parent=1 // pred_region
      _
    $region25: #{tpu_custom_call.1} parent=1 // pred_fallthru
      _
    // Predicated region
    $region26: #{tpu_custom_call.1} parent=1 // pred_check
      _
    $region27: #{tpu_custom_call.1} parent=1 // pred_check_branch
      %44 = sbr.rel (0) target = $region29
    $region28: #{tpu_custom_call.1} parent=1 // pred_region
      %45 = dma.done [#allocation3], 64
    $region29: #{tpu_custom_call.1} parent=1 // pred_fallthru
      _
    // Predicated region
    $region30: #{tpu_custom_call.1} parent=1 // pred_check
      _
    $region31: #{tpu_custom_call.1} parent=1 // pred_check_branch
      %47 = sbr.rel (0) target = $region33
    $region32: #{tpu_custom_call.1} parent=1 // pred_region
      %48 = dma.done [#allocation5], 256
    $region33: #{tpu_custom_call.1} parent=1 // pred_fallthru
      _
    %v50 = vld [vmem:[%s5] sm:$0x7]
    %v51 = vld [vmem:[%s0] sm:$0xf]
    %v52 = vld [vmem:[#allocation2] sm:$0xf]
    %54 = vrot.lane.b32.xlu0 %v52, 24
    %v55 = vpop.permute.xlu0 %54
    %vm57 = vcmask 195584
    %v58 = vsel %vm57, %v51, %v55
    %v59 = vpack.c.bf16 %v58, %v58
    %v60 = vld [vmem:[#allocation4] sm:$0xf]
    %v61 = vld [vmem:[#allocation4 + $0x4] sm:$0xf]
    %v62 = vld [vmem:[#allocation4 + $0x8] sm:$0xf]
    %v63 = vld [vmem:[#allocation4 + $0xc] sm:$0xf]
    %v64 = vlaneseq
    %v65 = vshrl.u32 %v64, 7
    %v66 = vsub.s32 0, %v65
    %v67 = vrot.slane %v50, %v66
    %v72 = vunpack.c.l.b16 %v60
    %v73 = vunpack.c.l.b16 %v61
    %v74 = vunpack.c.l.b16 %v62
    %v75 = vunpack.c.l.b16 %v63
    %v76 = vpack.c.b16 %v73, %v72
    %v77 = vpack.c.b16 %v75, %v74
    %vm80 = vcmask 261120
    %v82 = vsel %vm80, %v59, 0
    %84 = vmatprep.subr.bf16.mxu0 0
    %85 = vmatpush1.bf16.msra.mxu0 0
    %86 = vmatprep.subr.bf16.mxu0 0
    %87 = vmatpush1.bf16.msra.mxu0 0
    %88 = vmatprep.subr.bf16.mxu0 0
    %89 = vmatpush1.bf16.msra.mxu0 0
    %90 = vmatprep.subr.bf16.mxu0 0
    %91 = vmatpush1.bf16.msra.mxu0 0
    %92 = vmatprep.subr.bf16.mxu0 0
    %93 = vmatpush1.bf16.msra.mxu0 0
    %94 = vmatprep.subr.bf16.mxu0 0
    %95 = vmatpush1.bf16.msra.mxu0 0
    %96 = vmatprep.subr.bf16.mxu0 0
    %97 = vmatpush1.bf16.msra.mxu0 %v77
    %98 = vmatprep.subr.bf16.mxu0 0
    %99 = vmatpush1.bf16.msra.mxu0 %v76
    %100 = vmatprep.subr.bf16.mxu0 0
    %101 = vmatpush2.bf16.msra.mxu0 0
    %102 = vmatprep.subr.bf16.mxu0 0
    %103 = vmatpush2.bf16.msra.mxu0 0
    %104 = vmatprep.subr.bf16.mxu0 0
    %105 = vmatpush2.bf16.msra.mxu0 0
    %106 = vmatprep.subr.bf16.mxu0 0
    %107 = vmatpush2.bf16.msra.mxu0 0
    %108 = vmatprep.subr.bf16.mxu0 0
    %109 = vmatpush2.bf16.msra.mxu0 0
    %110 = vmatprep.subr.bf16.mxu0 0
    %111 = vmatpush2.bf16.msra.mxu0 0
    %112 = vmatprep.subr.bf16.mxu0 0
    %113 = vmatpush2.bf16.msra.mxu0 0
    %114 = vmatprep.subr.bf16.mxu0 0
    %115 = vmatpush2.bf16.msra.mxu0 0
    %116 = vmatprep.mubr.bf16.mxu0 0
    %117 = vmatmul.mubr.bf16.gmra.mxu0 %v82
    %v118 = vpop.f32.mrf.mxu0
    %v119 = vadd.f32 %v67, %v118
    %v120 = vpop.f32.mrf.mxu0
    %v121 = vpop.f32.mrf.mxu0
    %v122 = vpop.f32.mrf.mxu0
    %123 = vdwg.mxu0
    %v124 = vmax.f32 %v119, 0.0
    %v125 = vpack.c.bf16 %v124, %v124
    %v126 = vld [vmem:[%s3] sm:$0xf]
    %v127 = vld [vmem:[%s3 + $0x4] sm:$0xf]
    %v128 = vld [vmem:[%s3 + $0x8] sm:$0xf]
    %v129 = vld [vmem:[%s3 + $0xc] sm:$0xf]
    %v130 = vld [vmem:[%s3 + $0x10] sm:$0xf]
    %v131 = vld [vmem:[%s3 + $0x14] sm:$0xf]
    %v132 = vld [vmem:[%s3 + $0x18] sm:$0xf]
    %v133 = vld [vmem:[%s3 + $0x1c] sm:$0xf]
    %v134 = vlaneseq
    %v135 = vshrl.u32 %v134, 7
    %v136 = vsub.s32 1, %v135
    %v137 = vrot.slane %v50, %v136
    %v146 = vunpack.c.l.b16 %v126
    %v147 = vunpack.c.l.b16 %v127
    %v148 = vunpack.c.l.b16 %v128
    %v149 = vunpack.c.l.b16 %v129
    %v150 = vunpack.c.l.b16 %v130
    %v151 = vunpack.c.l.b16 %v131
    %v152 = vunpack.c.l.b16 %v132
    %v153 = vunpack.c.l.b16 %v133
    %v154 = vpack.c.b16 %v147, %v146
    %v155 = vpack.c.b16 %v149, %v148
    %v156 = vpack.c.b16 %v151, %v150
    %v157 = vpack.c.b16 %v153, %v152
    %vm162 = vcmask 523264
    %v164 = vsel %vm162, %v125, 0
    %166 = vmatprep.subr.bf16.mxu0 0
    %167 = vmatpush1.bf16.msra.mxu0 0
    %168 = vmatprep.subr.bf16.mxu0 0
    %169 = vmatpush1.bf16.msra.mxu0 0
    %170 = vmatprep.subr.bf16.mxu0 0
    %171 = vmatpush1.bf16.msra.mxu0 0
    %172 = vmatprep.subr.bf16.mxu0 0
    %173 = vmatpush1.bf16.msra.mxu0 0
    %174 = vmatprep.subr.bf16.mxu0 0
    %175 = vmatpush1.bf16.msra.mxu0 %v157
    %176 = vmatprep.subr.bf16.mxu0 0
    %177 = vmatpush1.bf16.msra.mxu0 %v156
    %178 = vmatprep.subr.bf16.mxu0 0
    %179 = vmatpush1.bf16.msra.mxu0 %v155
    %180 = vmatprep.subr.bf16.mxu0 0
    %181 = vmatpush1.bf16.msra.mxu0 %v154
    %182 = vmatprep.subr.bf16.mxu0 0
    %183 = vmatpush2.bf16.msra.mxu0 0
    %184 = vmatprep.subr.bf16.mxu0 0
    %185 = vmatpush2.bf16.msra.mxu0 0
    %186 = vmatprep.subr.bf16.mxu0 0
    %187 = vmatpush2.bf16.msra.mxu0 0
    %188 = vmatprep.subr.bf16.mxu0 0
    %189 = vmatpush2.bf16.msra.mxu0 0
    %190 = vmatprep.subr.bf16.mxu0 0
    %191 = vmatpush2.bf16.msra.mxu0 0
    %192 = vmatprep.subr.bf16.mxu0 0
    %193 = vmatpush2.bf16.msra.mxu0 0
    %194 = vmatprep.subr.bf16.mxu0 0
    %195 = vmatpush2.bf16.msra.mxu0 0
    %196 = vmatprep.subr.bf16.mxu0 0
    %197 = vmatpush2.bf16.msra.mxu0 0
    %198 = vmatprep.mubr.bf16.mxu0 0
    %199 = vmatmul.mubr.bf16.gmra.mxu0 %v164
    %v200 = vpop.f32.mrf.mxu0
    %v201 = vadd.f32 %v137, %v200
    %v202 = vpop.f32.mrf.mxu0
    %v203 = vpop.f32.mrf.mxu0
    %v204 = vpop.f32.mrf.mxu0
    %205 = vdwg.mxu0
    %v206 = vmax.f32 %v201, 0.0
    %v207 = vpack.c.bf16 %v206, %v206
    %v208 = vld [vmem:[%s4] sm:$0xf]
    %v209 = vld [vmem:[%s4 + $0x4] sm:$0xf]
    %v210 = vld [vmem:[%s4 + $0x8] sm:$0xf]
    %v211 = vld [vmem:[%s4 + $0xc] sm:$0xf]
    %v212 = vld [vmem:[%s4 + $0x10] sm:$0xf]
    %v213 = vld [vmem:[%s4 + $0x14] sm:$0xf]
    %v214 = vld [vmem:[%s4 + $0x18] sm:$0xf]
    %v215 = vld [vmem:[%s4 + $0x1c] sm:$0xf]
    %v216 = vlaneseq
    %v217 = vshrl.u32 %v216, 7
    %v218 = vsub.s32 2, %v217
    %v219 = vrot.slane %v50, %v218
    %v228 = vunpack.c.l.b16 %v208
    %v229 = vunpack.c.l.b16 %v209
    %v230 = vunpack.c.l.b16 %v210
    %v231 = vunpack.c.l.b16 %v211
    %v232 = vunpack.c.l.b16 %v212
    %v233 = vunpack.c.l.b16 %v213
    %v234 = vunpack.c.l.b16 %v214
    %v235 = vunpack.c.l.b16 %v215
    %v236 = vpack.c.b16 %v229, %v228
    %v237 = vpack.c.b16 %v231, %v230
    %v238 = vpack.c.b16 %v233, %v232
    %v239 = vpack.c.b16 %v235, %v234
    %v245 = vsel %vm162, %v207, 0
    %247 = vmatprep.subr.bf16.mxu0 0
    %248 = vmatpush1.bf16.msra.mxu0 0
    %249 = vmatprep.subr.bf16.mxu0 0
    %250 = vmatpush1.bf16.msra.mxu0 0
    %251 = vmatprep.subr.bf16.mxu0 0
    %252 = vmatpush1.bf16.msra.mxu0 0
    %253 = vmatprep.subr.bf16.mxu0 0
    %254 = vmatpush1.bf16.msra.mxu0 0
    %255 = vmatprep.subr.bf16.mxu0 0
    %256 = vmatpush1.bf16.msra.mxu0 %v239
    %257 = vmatprep.subr.bf16.mxu0 0
    %258 = vmatpush1.bf16.msra.mxu0 %v238
    %259 = vmatprep.subr.bf16.mxu0 0
    %260 = vmatpush1.bf16.msra.mxu0 %v237
    %261 = vmatprep.subr.bf16.mxu0 0
    %262 = vmatpush1.bf16.msra.mxu0 %v236
    %263 = vmatprep.subr.bf16.mxu0 0
    %264 = vmatpush2.bf16.msra.mxu0 0
    %265 = vmatprep.subr.bf16.mxu0 0
    %266 = vmatpush2.bf16.msra.mxu0 0
    %267 = vmatprep.subr.bf16.mxu0 0
    %268 = vmatpush2.bf16.msra.mxu0 0
    %269 = vmatprep.subr.bf16.mxu0 0
    %270 = vmatpush2.bf16.msra.mxu0 0
    %271 = vmatprep.subr.bf16.mxu0 0
    %272 = vmatpush2.bf16.msra.mxu0 0
    %273 = vmatprep.subr.bf16.mxu0 0
    %274 = vmatpush2.bf16.msra.mxu0 0
    %275 = vmatprep.subr.bf16.mxu0 0
    %276 = vmatpush2.bf16.msra.mxu0 0
    %277 = vmatprep.subr.bf16.mxu0 0
    %278 = vmatpush2.bf16.msra.mxu0 0
    %279 = vmatprep.mubr.bf16.mxu0 0
    %280 = vmatmul.mubr.bf16.gmra.mxu0 %v245
    %v281 = vpop.f32.mrf.mxu0
    %v282 = vadd.f32 %v219, %v281
    %v283 = vpop.f32.mrf.mxu0
    %v284 = vpop.f32.mrf.mxu0
    %v285 = vpop.f32.mrf.mxu0
    %286 = vdwg.mxu0
    %vm287 = vcmask 11264
    %288 = vst.msk [vmem:[%s6] sm:$0xf] %vm287, %v282
    // Predicated region
    $region34: #{tpu_custom_call.1} parent=1 // pred_check
      _
    $region35: #{tpu_custom_call.1} parent=1 // pred_check_branch
      %290 = sbr.rel (0) target = $region37
    $region36: #{tpu_custom_call.1} parent=1 // pred_region
      _
    $region37: #{tpu_custom_call.1} parent=1 // pred_fallthru
      _
    // Predicated region
    $region38: #{tpu_custom_call.1} parent=1 // pred_check
      _
    $region39: #{tpu_custom_call.1} parent=1 // pred_check_branch
      %292 = sbr.rel (0) target = $region41
    $region40: #{tpu_custom_call.1} parent=1 // pred_region
      _
    $region41: #{tpu_custom_call.1} parent=1 // pred_fallthru
      _
    %293 = vsyncpa [#allocation3], 1
    %294 = vsyncpa [#allocation5], 1

// kernel: tpu_custom_call.1
$region0: #{tpu_custom_call.1}
  #allocation0 [shape = 'u32[]', space=smem, size = 0x4, offset = 0x4, fixed_abs, tag = 'smem constant byte address 0x4 - core index']
  #allocation1 [shape = 'u32[144,128]{1,0:T(1,128)}', space=vmem, size = 0x12000, scoped, tag = 'internal scratch']
  %s0 = inlined_call_operand.vmem [shape: f32[4,24], index: 0, kind: input, shape index: {}]
  %s1 = inlined_call_operand.vmem [shape: f32[4,8], index: 1, kind: input, shape index: {}]
  %s2 = inlined_call_operand.hbm [shape: bf16[24,64], index: 2, kind: input, shape index: {}]
  %s3 = inlined_call_operand.hbm [shape: bf16[8,64], index: 3, kind: input, shape index: {}]
  %s4 = inlined_call_operand.vmem [shape: bf16[64,64], index: 4, kind: input, shape index: {}]
  %s5 = inlined_call_operand.vmem [shape: bf16[64,2], index: 5, kind: input, shape index: {}]
  %s6 = inlined_call_operand.hbm [shape: f32[3,64], index: 6, kind: input, shape index: {}]
  %s7 = inlined_call_operand.vmem [shape: f32[4,2], index: 7, kind: output, shape index: {}]
  %s8 = sld [smem:[#allocation0]]
  $region50: #{tpu_custom_call.1} parent=0
    _
  %s10 = ssub.s32 1, %s8
  %s11 = scalar_select 0, %s10, %s8
  $region1: #{tpu_custom_call.1} parent=0
    #allocation2 [shape = 'u8[6144]{0}', space=vmem, size = 0x1800, scoped, tag = 'input window, operand 2, single buffered']
    #allocation3 [shape = 's32[1]{0}', space=sflag, size = 0x4, scoped, tag = 'scoped memory for tpu_custom_call.1']
    #allocation4 [shape = 'u8[2048]{0}', space=vmem, size = 0x800, scoped, tag = 'input window, operand 3, single buffered']
    #allocation5 [shape = 's32[1]{0}', space=sflag, size = 0x4, scoped, tag = 'scoped memory for tpu_custom_call.1']
    #allocation6 [shape = 'u8[2048]{0}', space=vmem, size = 0x800, scoped, tag = 'input window, operand 6, single buffered']
    %12 = vsyncpa [#allocation3], 0
    %13 = vsyncpa [#allocation5], 0
    // Predicated region
    $region2: #{tpu_custom_call.1} parent=1 // pred_check
      _
    $region3: #{tpu_custom_call.1} parent=1 // pred_check_branch
      %15 = sbr.rel (0) target = $region5
    $region4: #{tpu_custom_call.1} parent=1 // pred_region
      _
    $region5: #{tpu_custom_call.1} parent=1 // pred_fallthru
      _
    // Predicated region
    $region6: #{tpu_custom_call.1} parent=1 // pred_check
      _
    $region7: #{tpu_custom_call.1} parent=1 // pred_check_branch
      %17 = sbr.rel (0) target = $region9
    $region8: #{tpu_custom_call.1} parent=1 // pred_region
      _
    $region9: #{tpu_custom_call.1} parent=1 // pred_fallthru
      _
    // Predicated region
    $region10: #{tpu_custom_call.1} parent=1 // pred_check
      _
    $region11: #{tpu_custom_call.1} parent=1 // pred_check_branch
      %19 = sbr.rel (0) target = $region13
    $region12: #{tpu_custom_call.1} parent=1 // pred_region
      %s21 = ssub.s32 192, 192
      %22 = vsyncadd [#allocation3], %s21
      %s23 = sshll.u32 [#allocation2], 4
      %s24 = int_to_ptr.vmem [resolvable:$true] %s23
      %29 = dma.hbm_to_vmem [thread:$0]  %s2, 192, %s24, [#allocation3], 64, 64, 4
    $region13: #{tpu_custom_call.1} parent=1 // pred_fallthru
      _
    // Predicated region
    $region14: #{tpu_custom_call.1} parent=1 // pred_check
      _
    $region15: #{tpu_custom_call.1} parent=1 // pred_check_branch
      %31 = sbr.rel (0) target = $region17
    $region16: #{tpu_custom_call.1} parent=1 // pred_region
      %s33 = ssub.s32 64, 64
      %34 = vsyncadd [#allocation5], %s33
      %s36 = sshll.u32 [#allocation4], 4
      %s37 = int_to_ptr.vmem [resolvable:$true] %s36
      %39 = dma.hbm_to_vmem [thread:$0]  %s3, 64, %s37, [#allocation5]
    $region17: #{tpu_custom_call.1} parent=1 // pred_fallthru
      _
    // Predicated region
    $region18: #{tpu_custom_call.1} parent=1 // pred_check
      _
    $region19: #{tpu_custom_call.1} parent=1 // pred_check_branch
      %41 = sbr.rel (0) target = $region21
    $region20: #{tpu_custom_call.1} parent=1 // pred_region
      _
    $region21: #{tpu_custom_call.1} parent=1 // pred_fallthru
      _
    // Predicated region
    $region22: #{tpu_custom_call.1} parent=1 // pred_check
      _
    $region23: #{tpu_custom_call.1} parent=1 // pred_check_branch
      %43 = sbr.rel (0) target = $region25
    $region24: #{tpu_custom_call.1} parent=1 // pred_region
      _
    $region25: #{tpu_custom_call.1} parent=1 // pred_fallthru
      _
    // Predicated region
    $region26: #{tpu_custom_call.1} parent=1 // pred_check
      _
    $region27: #{tpu_custom_call.1} parent=1 // pred_check_branch
      %45 = sbr.rel (0) target = $region29
    $region28: #{tpu_custom_call.1} parent=1 // pred_region
      %s47 = ssub.s32 64, 64
      %48 = vsyncadd [#allocation5], %s47
      %s50 = sshll.u32 [#allocation6], 4
      %s51 = int_to_ptr.vmem [resolvable:$true] %s50
      %53 = dma.hbm_to_vmem [thread:$0]  %s6, 64, %s51, [#allocation5]
    $region29: #{tpu_custom_call.1} parent=1 // pred_fallthru
      _
    // Predicated region
    $region30: #{tpu_custom_call.1} parent=1 // pred_check
      _
    $region31: #{tpu_custom_call.1} parent=1 // pred_check_branch
      %55 = sbr.rel (0) target = $region33
    $region32: #{tpu_custom_call.1} parent=1 // pred_region
      %56 = dma.done [#allocation3], 192
    $region33: #{tpu_custom_call.1} parent=1 // pred_fallthru
      _
    // Predicated region
    $region34: #{tpu_custom_call.1} parent=1 // pred_check
      _
    $region35: #{tpu_custom_call.1} parent=1 // pred_check_branch
      %58 = sbr.rel (0) target = $region37
    $region36: #{tpu_custom_call.1} parent=1 // pred_region
      %59 = dma.done [#allocation5], 64
    $region37: #{tpu_custom_call.1} parent=1 // pred_fallthru
      _
    // Predicated region
    $region38: #{tpu_custom_call.1} parent=1 // pred_check
      _
    $region39: #{tpu_custom_call.1} parent=1 // pred_check_branch
      %61 = sbr.rel (0) target = $region41
    $region40: #{tpu_custom_call.1} parent=1 // pred_region
      %62 = dma.done [#allocation5], 64
    $region41: #{tpu_custom_call.1} parent=1 // pred_fallthru
      _
    %v64 = vld [vmem:[#allocation6] sm:$0x7]
    %v65 = vld [vmem:[%s0] sm:$0xf]
    %v66 = vpack.c.bf16 %v65, %v65
    %v67 = vld [vmem:[#allocation2] sm:$0xf]
    %v68 = vld [vmem:[#allocation2 + $0x4] sm:$0xf]
    %v69 = vld [vmem:[#allocation2 + $0x8] sm:$0xf]
    %v70 = vld [vmem:[%s1] sm:$0xf]
    %v71 = vpack.c.bf16 %v70, %v70
    %v72 = vld [vmem:[#allocation4] sm:$0xf]
    %vm73 = vcmask 64512
    %v75 = vsel %vm73, %v71, 0
    %vm77 = vcmask 1043456
    %v79 = vsel %vm77, %v72, 0
    %81 = vmatprep.subr.bf16.mxu0 0
    %82 = vmatpush1.bf16.msra.mxu0 0
    %83 = vmatprep.subr.bf16.mxu0 0
    %84 = vmatpush1.bf16.msra.mxu0 0
    %85 = vmatprep.subr.bf16.mxu0 0
    %86 = vmatpush1.bf16.msra.mxu0 0
    %87 = vmatprep.subr.bf16.mxu0 0
    %88 = vmatpush1.bf16.msra.mxu0 0
    %89 = vmatprep.subr.bf16.mxu0 0
    %90 = vmatpush1.bf16.msra.mxu0 0
    %91 = vmatprep.subr.bf16.mxu0 0
    %92 = vmatpush1.bf16.msra.mxu0 0
    %93 = vmatprep.subr.bf16.mxu0 0
    %94 = vmatpush1.bf16.msra.mxu0 0
    %95 = vmatprep.subr.bf16.mxu0 0
    %96 = vmatpush1.bf16.msra.mxu0 %v79
    %97 = vmatprep.subr.bf16.mxu0 0
    %98 = vmatpush2.bf16.msra.mxu0 0
    %99 = vmatprep.subr.bf16.mxu0 0
    %100 = vmatpush2.bf16.msra.mxu0 0
    %101 = vmatprep.subr.bf16.mxu0 0
    %102 = vmatpush2.bf16.msra.mxu0 0
    %103 = vmatprep.subr.bf16.mxu0 0
    %104 = vmatpush2.bf16.msra.mxu0 0
    %105 = vmatprep.subr.bf16.mxu0 0
    %106 = vmatpush2.bf16.msra.mxu0 0
    %107 = vmatprep.subr.bf16.mxu0 0
    %108 = vmatpush2.bf16.msra.mxu0 0
    %109 = vmatprep.subr.bf16.mxu0 0
    %110 = vmatpush2.bf16.msra.mxu0 0
    %111 = vmatprep.subr.bf16.mxu0 0
    %112 = vmatpush2.bf16.msra.mxu0 0
    %113 = vmatprep.mubr.bf16.mxu0 0
    %114 = vmatmul.mubr.bf16.gmra.mxu0 %v75
    %v115 = vpop.f32.mrf.mxu0
    %v116 = vadd.f32 0.0, %v115
    %v117 = vpop.f32.mrf.mxu0
    %v118 = vpop.f32.mrf.mxu0
    %v119 = vpop.f32.mrf.mxu0
    %120 = vdwg.mxu0
    %v124 = vunpack.c.l.b16 %v67
    %v125 = vunpack.c.l.b16 %v68
    %v126 = vunpack.c.l.b16 %v69
    %v127 = vpack.c.b16 %v125, %v124
    %v128 = vpack.c.b16 %v126, %v126
    %vm130 = vcmask 195584
    %v132 = vsel %vm130, %v66, 0
    %v135 = vsel %vm77, %v128, 0
    %137 = vmatprep.subr.bf16.mxu0 0
    %138 = vmatpush1.bf16.msra.mxu0 0
    %139 = vmatprep.subr.bf16.mxu0 0
    %140 = vmatpush1.bf16.msra.mxu0 0
    %141 = vmatprep.subr.bf16.mxu0 0
    %142 = vmatpush1.bf16.msra.mxu0 0
    %143 = vmatprep.subr.bf16.mxu0 0
    %144 = vmatpush1.bf16.msra.mxu0 0
    %145 = vmatprep.subr.bf16.mxu0 0
    %146 = vmatpush1.bf16.msra.mxu0 0
    %147 = vmatprep.subr.bf16.mxu0 0
    %148 = vmatpush1.bf16.msra.mxu0 0
    %149 = vmatprep.subr.bf16.mxu0 0
    %150 = vmatpush1.bf16.msra.mxu0 %v135
    %151 = vmatprep.subr.bf16.mxu0 0
    %152 = vmatpush1.bf16.msra.mxu0 %v127
    %153 = vmatprep.subr.bf16.mxu0 0
    %154 = vmatpush2.bf16.msra.mxu0 0
    %155 = vmatprep.subr.bf16.mxu0 0
    %156 = vmatpush2.bf16.msra.mxu0 0
    %157 = vmatprep.subr.bf16.mxu0 0
    %158 = vmatpush2.bf16.msra.mxu0 0
    %159 = vmatprep.subr.bf16.mxu0 0
    %160 = vmatpush2.bf16.msra.mxu0 0
    %161 = vmatprep.subr.bf16.mxu0 0
    %162 = vmatpush2.bf16.msra.mxu0 0
    %163 = vmatprep.subr.bf16.mxu0 0
    %164 = vmatpush2.bf16.msra.mxu0 0
    %165 = vmatprep.subr.bf16.mxu0 0
    %166 = vmatpush2.bf16.msra.mxu0 0
    %167 = vmatprep.subr.bf16.mxu0 0
    %168 = vmatpush2.bf16.msra.mxu0 0
    %169 = vmatprep.mubr.bf16.mxu0 0
    %170 = vmatmul.mubr.bf16.gmra.mxu0 %v132
    %v171 = vpop.f32.mrf.mxu0
    %v172 = vadd.f32 %v116, %v171
    %v173 = vpop.f32.mrf.mxu0
    %v174 = vpop.f32.mrf.mxu0
    %v175 = vpop.f32.mrf.mxu0
    %176 = vdwg.mxu0
    %v177 = vlaneseq
    %v178 = vshrl.u32 %v177, 7
    %v179 = vsub.s32 0, %v178
    %v180 = vrot.slane %v64, %v179
    %v181 = vadd.f32 %v172, %v180
    %v182 = vmax.f32 %v181, 0.0
    %v183 = vpack.c.bf16 %v182, %v182
    %v184 = vld [vmem:[%s4] sm:$0xf]
    %v185 = vld [vmem:[%s4 + $0x4] sm:$0xf]
    %v186 = vld [vmem:[%s4 + $0x8] sm:$0xf]
    %v187 = vld [vmem:[%s4 + $0xc] sm:$0xf]
    %v188 = vld [vmem:[%s4 + $0x10] sm:$0xf]
    %v189 = vld [vmem:[%s4 + $0x14] sm:$0xf]
    %v190 = vld [vmem:[%s4 + $0x18] sm:$0xf]
    %v191 = vld [vmem:[%s4 + $0x1c] sm:$0xf]
    %v192 = vlaneseq
    %v193 = vshrl.u32 %v192, 7
    %v194 = vsub.s32 1, %v193
    %v195 = vrot.slane %v64, %v194
    %v204 = vunpack.c.l.b16 %v184
    %v205 = vunpack.c.l.b16 %v185
    %v206 = vunpack.c.l.b16 %v186
    %v207 = vunpack.c.l.b16 %v187
    %v208 = vunpack.c.l.b16 %v188
    %v209 = vunpack.c.l.b16 %v189
    %v210 = vunpack.c.l.b16 %v190
    %v211 = vunpack.c.l.b16 %v191
    %v212 = vpack.c.b16 %v205, %v204
    %v213 = vpack.c.b16 %v207, %v206
    %v214 = vpack.c.b16 %v209, %v208
    %v215 = vpack.c.b16 %v211, %v210
    %vm220 = vcmask 523264
    %v222 = vsel %vm220, %v183, 0
    %224 = vmatprep.subr.bf16.mxu0 0
    %225 = vmatpush1.bf16.msra.mxu0 0
    %226 = vmatprep.subr.bf16.mxu0 0
    %227 = vmatpush1.bf16.msra.mxu0 0
    %228 = vmatprep.subr.bf16.mxu0 0
    %229 = vmatpush1.bf16.msra.mxu0 0
    %230 = vmatprep.subr.bf16.mxu0 0
    %231 = vmatpush1.bf16.msra.mxu0 0
    %232 = vmatprep.subr.bf16.mxu0 0
    %233 = vmatpush1.bf16.msra.mxu0 %v215
    %234 = vmatprep.subr.bf16.mxu0 0
    %235 = vmatpush1.bf16.msra.mxu0 %v214
    %236 = vmatprep.subr.bf16.mxu0 0
    %237 = vmatpush1.bf16.msra.mxu0 %v213
    %238 = vmatprep.subr.bf16.mxu0 0
    %239 = vmatpush1.bf16.msra.mxu0 %v212
    %240 = vmatprep.subr.bf16.mxu0 0
    %241 = vmatpush2.bf16.msra.mxu0 0
    %242 = vmatprep.subr.bf16.mxu0 0
    %243 = vmatpush2.bf16.msra.mxu0 0
    %244 = vmatprep.subr.bf16.mxu0 0
    %245 = vmatpush2.bf16.msra.mxu0 0
    %246 = vmatprep.subr.bf16.mxu0 0
    %247 = vmatpush2.bf16.msra.mxu0 0
    %248 = vmatprep.subr.bf16.mxu0 0
    %249 = vmatpush2.bf16.msra.mxu0 0
    %250 = vmatprep.subr.bf16.mxu0 0
    %251 = vmatpush2.bf16.msra.mxu0 0
    %252 = vmatprep.subr.bf16.mxu0 0
    %253 = vmatpush2.bf16.msra.mxu0 0
    %254 = vmatprep.subr.bf16.mxu0 0
    %255 = vmatpush2.bf16.msra.mxu0 0
    %256 = vmatprep.mubr.bf16.mxu0 0
    %257 = vmatmul.mubr.bf16.gmra.mxu0 %v222
    %v258 = vpop.f32.mrf.mxu0
    %v259 = vadd.f32 %v195, %v258
    %v260 = vpop.f32.mrf.mxu0
    %v261 = vpop.f32.mrf.mxu0
    %v262 = vpop.f32.mrf.mxu0
    %263 = vdwg.mxu0
    %v264 = vmax.f32 %v259, 0.0
    %v265 = vpack.c.bf16 %v264, %v264
    %v266 = vld [vmem:[%s5] sm:$0xf]
    %v267 = vld [vmem:[%s5 + $0x4] sm:$0xf]
    %v268 = vld [vmem:[%s5 + $0x8] sm:$0xf]
    %v269 = vld [vmem:[%s5 + $0xc] sm:$0xf]
    %v270 = vld [vmem:[%s5 + $0x10] sm:$0xf]
    %v271 = vld [vmem:[%s5 + $0x14] sm:$0xf]
    %v272 = vld [vmem:[%s5 + $0x18] sm:$0xf]
    %v273 = vld [vmem:[%s5 + $0x1c] sm:$0xf]
    %v274 = vlaneseq
    %v275 = vshrl.u32 %v274, 7
    %v276 = vsub.s32 2, %v275
    %v277 = vrot.slane %v64, %v276
    %v286 = vunpack.c.l.b16 %v266
    %v287 = vunpack.c.l.b16 %v267
    %v288 = vunpack.c.l.b16 %v268
    %v289 = vunpack.c.l.b16 %v269
    %v290 = vunpack.c.l.b16 %v270
    %v291 = vunpack.c.l.b16 %v271
    %v292 = vunpack.c.l.b16 %v272
    %v293 = vunpack.c.l.b16 %v273
    %v294 = vpack.c.b16 %v287, %v286
    %v295 = vpack.c.b16 %v289, %v288
    %v296 = vpack.c.b16 %v291, %v290
    %v297 = vpack.c.b16 %v293, %v292
    %v303 = vsel %vm220, %v265, 0
    %305 = vmatprep.subr.bf16.mxu0 0
    %306 = vmatpush1.bf16.msra.mxu0 0
    %307 = vmatprep.subr.bf16.mxu0 0
    %308 = vmatpush1.bf16.msra.mxu0 0
    %309 = vmatprep.subr.bf16.mxu0 0
    %310 = vmatpush1.bf16.msra.mxu0 0
    %311 = vmatprep.subr.bf16.mxu0 0
    %312 = vmatpush1.bf16.msra.mxu0 0
    %313 = vmatprep.subr.bf16.mxu0 0
    %314 = vmatpush1.bf16.msra.mxu0 %v297
    %315 = vmatprep.subr.bf16.mxu0 0
    %316 = vmatpush1.bf16.msra.mxu0 %v296
    %317 = vmatprep.subr.bf16.mxu0 0
    %318 = vmatpush1.bf16.msra.mxu0 %v295
    %319 = vmatprep.subr.bf16.mxu0 0
    %320 = vmatpush1.bf16.msra.mxu0 %v294
    %321 = vmatprep.subr.bf16.mxu0 0
    %322 = vmatpush2.bf16.msra.mxu0 0
    %323 = vmatprep.subr.bf16.mxu0 0
    %324 = vmatpush2.bf16.msra.mxu0 0
    %325 = vmatprep.subr.bf16.mxu0 0
    %326 = vmatpush2.bf16.msra.mxu0 0
    %327 = vmatprep.subr.bf16.mxu0 0
    %328 = vmatpush2.bf16.msra.mxu0 0
    %329 = vmatprep.subr.bf16.mxu0 0
    %330 = vmatpush2.bf16.msra.mxu0 0
    %331 = vmatprep.subr.bf16.mxu0 0
    %332 = vmatpush2.bf16.msra.mxu0 0
    %333 = vmatprep.subr.bf16.mxu0 0
    %334 = vmatpush2.bf16.msra.mxu0 0
    %335 = vmatprep.subr.bf16.mxu0 0
    %336 = vmatpush2.bf16.msra.mxu0 0
    %337 = vmatprep.mubr.bf16.mxu0 0
    %338 = vmatmul.mubr.bf16.gmra.mxu0 %v303
    %v339 = vpop.f32.mrf.mxu0
    %v340 = vadd.f32 %v277, %v339
    %v341 = vpop.f32.mrf.mxu0
    %v342 = vpop.f32.mrf.mxu0
    %v343 = vpop.f32.mrf.mxu0
    %344 = vdwg.mxu0
    %vm345 = vcmask 11264
    %346 = vst.msk [vmem:[%s7] sm:$0xf] %vm345, %v340
    // Predicated region
    $region42: #{tpu_custom_call.1} parent=1 // pred_check
      _
    $region43: #{tpu_custom_call.1} parent=1 // pred_check_branch
      %348 = sbr.rel (0) target = $region45
    $region44: #{tpu_custom_call.1} parent=1 // pred_region
      _
    $region45: #{tpu_custom_call.1} parent=1 // pred_fallthru
      _
    // Predicated region
    $region46: #{tpu_custom_call.1} parent=1 // pred_check
      _
    $region47: #{tpu_custom_call.1} parent=1 // pred_check_branch
      %350 = sbr.rel (0) target = $region49
    $region48: #{tpu_custom_call.1} parent=1 // pred_region
      _
    $region49: #{tpu_custom_call.1} parent=1 // pred_fallthru
      _
    %351 = vsyncpa [#allocation3], 1
    %352 = vsyncpa [#allocation5], 1

</llo_original>
